<compile_context>
chip_gen: v5e
topology: v5e:2x2
jax: 0.10.0
libtpu: 0.0.40
codegen_flags: <defaults>
</compile_context>

<pallas_src>
import functools

import jax
import jax.numpy as jnp
from jax.experimental import pallas as pl
from jax.experimental.pallas import tpu as pltpu


def _choose_tile(seq_len, dim):
    """Dim-aware seq tile: ~2 MiB per f32 output block, clamped to [256, 2048]."""
    tile_s = (2 * 1024 * 1024) // (4 * dim)
    tile_s = max(256, min(2048, tile_s))
    tile_s = (tile_s // 8) * 8          # keep sublane-aligned
    if seq_len <= tile_s:
        # Single block == full array shape (always layout-legal, row0 == 0).
        return seq_len
    return tile_s


def _rope_kernel(inv_freq_ref, cosb_ref, sinb_ref, cos_ref, sin_ref, *, tile_s):
    # inv_freq_ref : (1, dim)       lane-duplicated inv_freq (resident)
    # cosb_ref/sinb_ref : (tile_s, dim)  cos/sin(i * inv_freq), i in [0, tile_s)
    # cos_ref/sin_ref   : (tile_s, dim)  output tiles
    #
    # angle[i, j] = (row0 + i) * f[j] = row0*f[j] + i*f[j]
    #   cos(a + b) = cos a * cos b - sin a * sin b
    #   sin(a + b) = sin a * cos b + cos a * sin b
    row0 = (pl.program_id(0) * tile_s).astype(jnp.float32)
    a = row0 * inv_freq_ref[...]                # (1, dim)
    cos_a = jnp.cos(a)                          # O(dim) transcendentals per tile
    sin_a = jnp.sin(a)
    cb = cosb_ref[...]                          # (tile_s, dim)
    sb = sinb_ref[...]
    cos_ref[...] = cos_a * cb - sin_a * sb      # lane-dense full-width stores
    sin_ref[...] = sin_a * cb + cos_a * sb


def _rope_tables(inv_freq, seq_len, dim, *, core_parallel=False):
    """Build (cos, sin) tables of shape (seq_len, dim) with a tiled Pallas kernel."""
    half = dim // 2
    assert inv_freq.shape == (half,)
    tile_s = _choose_tile(seq_len, dim)
    grid = (pl.cdiv(seq_len, tile_s),)

    # One-time precompute (amortized over all seq tiles): lane-duplicated
    # inv_freq row and the intra-tile phase tables.
    inv_freq_dup = jnp.concatenate([inv_freq, inv_freq]).reshape(1, dim)
    i = jnp.arange(tile_s, dtype=jnp.float32).reshape(tile_s, 1)
    phase_b = i * inv_freq_dup                                  # (tile_s, dim)
    cos_b = jnp.cos(phase_b)
    sin_b = jnp.sin(phase_b)

    kernel = functools.partial(_rope_kernel, tile_s=tile_s)

    out_shapes = (
        jax.ShapeDtypeStruct((seq_len, dim), jnp.float32),
        jax.ShapeDtypeStruct((seq_len, dim), jnp.float32),
    )
    dim_sem = (pltpu.CORE_PARALLEL,) if core_parallel else (pltpu.PARALLEL,)

    cos, sin = pl.pallas_call(
        kernel,
        out_shape=out_shapes,
        grid_spec=pltpu.PrefetchScalarGridSpec(
            num_scalar_prefetch=0,
            grid=grid,
            in_specs=[
                # constant block index -> DMA'd once, resident across all tiles
                pl.BlockSpec((1, dim), lambda s: (0, 0)),
                pl.BlockSpec((tile_s, dim), lambda s: (0, 0)),
                pl.BlockSpec((tile_s, dim), lambda s: (0, 0)),
            ],
            out_specs=[
                pl.BlockSpec((tile_s, dim), lambda s: (s, 0)),
                pl.BlockSpec((tile_s, dim), lambda s: (s, 0)),
            ],
        ),
        compiler_params=pltpu.CompilerParams(
            dimension_semantics=dim_sem,
            # 2 outputs x 2 bufs + 2 tables x 2 bufs <= ~16 MiB worst case;
            # set explicitly so v5e's 16 MiB scoped default doesn't shrink tiles.
            vmem_limit_bytes=32 * 1024 * 1024,
        ),
    )(inv_freq_dup, cos_b, sin_b)
    return cos, sin


class RotaryEmbedding:
    """JAX/Pallas port of the PyTorch RotaryEmbedding module."""

    def __init__(self, dim, base=10000):
        assert dim % 2 == 0, "dim must be even"
        self.dim = dim
        # deterministic "buffer" init, identical to the torch __init__
        exponent = jnp.arange(0, dim, 2, dtype=jnp.float32) / dim
        self.inv_freq = (1.0 / (base ** exponent)).astype(jnp.float32)  # (dim/2,)
        self.seq_len_cached = None
        self.cos_cached = None
        self.sin_cached = None

    def __call__(self, x, seq_len=None):
        # x is only used for device placement in the torch version; the math
        # depends solely on seq_len and the inv_freq buffer.
        if seq_len is None:
            seq_len = x.shape[-2]
        if seq_len != self.seq_len_cached:
            self.seq_len_cached = seq_len
            self.cos_cached, self.sin_cached = _rope_tables(
                self.inv_freq, seq_len, self.dim)
        return (self.cos_cached, self.sin_cached)


def _reference_tables(seq_len, inv_freq):
    t = jnp.arange(seq_len, dtype=jnp.float32)
    freqs = jnp.einsum("i,j->ij", t, inv_freq)
    emb = jnp.concatenate([freqs, freqs], axis=-1)
    return jnp.cos(emb), jnp.sin(emb)


if __name__ == "__main__":
    key = jax.random.PRNGKey(0)

    # --- small shapes consistent with the module (single tile, row0 == 0) ---
    batch, seq, dim = 2, 8, 32
    x = jax.random.normal(key, (batch, seq, dim), dtype=jnp.float32)

    rope = RotaryEmbedding(dim)
    cos, sin = rope(x, seq_len=seq)
    jax.block_until_ready((cos, sin))

    cos_ref, sin_ref = _reference_tables(seq, rope.inv_freq)
    assert cos.shape == (seq, dim) and sin.shape == (seq, dim)
    assert jnp.allclose(cos, cos_ref, atol=1e-5)
    assert jnp.allclose(sin, sin_ref, atol=1e-5)

    # caching path (same seq_len -> no recompute)
    cos2, sin2 = rope(x, seq_len=seq)
    assert cos2 is cos and sin2 is sin

    # seq_len=None path (derived from x) hits the same cache entry
    cos3, sin3 = rope(x)
    assert cos3 is cos and sin3 is sin

    # --- multi-tile + partial last tile, common RoPE head dim (dim=128) ---
    # Tolerance covers f32 angle-addition rounding (~row0 * 2^-24 radians).
    seq2, dim2 = 2056, 128
    rope2 = RotaryEmbedding(dim2)
    c2, s2 = rope2(jnp.zeros((1, seq2, dim2), dtype=jnp.float32), seq_len=seq2)
    jax.block_until_ready((c2, s2))
    c2_ref, s2_ref = _reference_tables(seq2, rope2.inv_freq)
    assert jnp.allclose(c2, c2_ref, atol=2e-3)
    assert jnp.allclose(s2, s2_ref, atol=2e-3)

    # --- multi-tile, wider head dim (dim=256) ---
    seq3, dim3 = 2056, 256
    rope3 = RotaryEmbedding(dim3)
    c3, s3 = rope3(jnp.zeros((1, seq3, dim3), dtype=jnp.float32), seq_len=seq3)
    jax.block_until_ready((c3, s3))
    c3_ref, s3_ref = _reference_tables(seq3, rope3.inv_freq)
    assert jnp.allclose(c3, c3_ref, atol=2e-3)
    assert jnp.allclose(s3, s3_ref, atol=2e-3)

    print("KERNEL_OK")
</pallas_src>

<mosaic_0001>
module attributes {stable_mosaic.version = 11 : i64} {
  func.func @_rope_kernel(%arg0: i32, %arg1: memref<1x32xf32, #tpu.memory_space<vmem>>, %arg2: memref<8x32xf32, #tpu.memory_space<vmem>>, %arg3: memref<8x32xf32, #tpu.memory_space<vmem>>, %arg4: memref<8x32xf32, #tpu.memory_space<vmem>>, %arg5: memref<8x32xf32, #tpu.memory_space<vmem>>) attributes {dimension_semantics = [#tpu.dimension_semantics<parallel>], iteration_bounds = array<i64: 1>, scalar_prefetch = 0 : i64, scratch_operands = 0 : i64, tpu.core_type = #tpu.core_type<tc>, window_params = [{pipeline_mode = #tpu.pipeline_mode<synchronous>, transform_indices = @transform_0, window_bounds = array<i64: 1, 32>}, {pipeline_mode = #tpu.pipeline_mode<synchronous>, transform_indices = @transform_1, window_bounds = array<i64: 8, 32>}, {pipeline_mode = #tpu.pipeline_mode<synchronous>, transform_indices = @transform_2, window_bounds = array<i64: 8, 32>}, {transform_indices = @transform_3, window_bounds = array<i64: 8, 32>}, {transform_indices = @transform_4, window_bounds = array<i64: 8, 32>}]} {
    %c8_i32 = arith.constant 8 : i32
    %0 = arith.muli %arg0, %c8_i32 : i32
    %1 = arith.sitofp %0 : i32 to f32
    %c0 = arith.constant 0 : index
    %c0_0 = arith.constant 0 : index
    %2 = vector.load %arg1[%c0, %c0_0] : memref<1x32xf32, #tpu.memory_space<vmem>>, vector<1x32xf32>
    %3 = vector.broadcast %1 : f32 to vector<1x32xf32>
    %4 = arith.mulf %3, %2 : vector<1x32xf32>
    %5 = math.cos %4 : vector<1x32xf32>
    %6 = math.sin %4 : vector<1x32xf32>
    %c0_1 = arith.constant 0 : index
    %c0_2 = arith.constant 0 : index
    %7 = vector.load %arg2[%c0_1, %c0_2] : memref<8x32xf32, #tpu.memory_space<vmem>>, vector<8x32xf32>
    %c0_3 = arith.constant 0 : index
    %c0_4 = arith.constant 0 : index
    %8 = vector.load %arg3[%c0_3, %c0_4] : memref<8x32xf32, #tpu.memory_space<vmem>>, vector<8x32xf32>
    %9 = vector.broadcast %5 : vector<1x32xf32> to vector<8x32xf32>
    %10 = arith.mulf %9, %7 : vector<8x32xf32>
    %11 = vector.broadcast %6 : vector<1x32xf32> to vector<8x32xf32>
    %12 = arith.mulf %11, %8 : vector<8x32xf32>
    %13 = arith.subf %10, %12 : vector<8x32xf32>
    %c0_5 = arith.constant 0 : index
    %c0_6 = arith.constant 0 : index
    %14 = vector.load %arg4[%c0_5, %c0_6] : memref<8x32xf32, #tpu.memory_space<vmem>>, vector<8x32xf32>
    tpu.vector_store %arg4[%c0_5, %c0_6], %13 {strides = array<i32>} : memref<8x32xf32, #tpu.memory_space<vmem>>, vector<8x32xf32>,
    %15 = vector.broadcast %6 : vector<1x32xf32> to vector<8x32xf32>
    %16 = arith.mulf %15, %7 : vector<8x32xf32>
    %17 = vector.broadcast %5 : vector<1x32xf32> to vector<8x32xf32>
    %18 = arith.mulf %17, %8 : vector<8x32xf32>
    %19 = arith.addf %16, %18 : vector<8x32xf32>
    %c0_7 = arith.constant 0 : index
    %c0_8 = arith.constant 0 : index
    %20 = vector.load %arg5[%c0_7, %c0_8] : memref<8x32xf32, #tpu.memory_space<vmem>>, vector<8x32xf32>
    tpu.vector_store %arg5[%c0_7, %c0_8], %19 {strides = array<i32>} : memref<8x32xf32, #tpu.memory_space<vmem>>, vector<8x32xf32>,
    return
  }
  func.func @transform_0(%arg0: i32) -> (i32, i32) {
    %c0_i32 = arith.constant 0 : i32
    %c0_i32_0 = arith.constant 0 : i32
    %c0_i32_1 = arith.constant 0 : i32
    return %c0_i32, %c0_i32_0 : i32, i32
  }
  func.func @transform_1(%arg0: i32) -> (i32, i32) {
    %c0_i32 = arith.constant 0 : i32
    %c0_i32_0 = arith.constant 0 : i32
    %c0_i32_1 = arith.constant 0 : i32
    return %c0_i32, %c0_i32_0 : i32, i32
  }
  func.func @transform_2(%arg0: i32) -> (i32, i32) {
    %c0_i32 = arith.constant 0 : i32
    %c0_i32_0 = arith.constant 0 : i32
    %c0_i32_1 = arith.constant 0 : i32
    return %c0_i32, %c0_i32_0 : i32, i32
  }
  func.func @transform_3(%arg0: i32) -> (i32, i32) {
    %c0_i32 = arith.constant 0 : i32
    %c0_i32_0 = arith.constant 0 : i32
    return %arg0, %c0_i32 : i32, i32
  }
  func.func @transform_4(%arg0: i32) -> (i32, i32) {
    %c0_i32 = arith.constant 0 : i32
    %c0_i32_0 = arith.constant 0 : i32
    return %arg0, %c0_i32 : i32, i32
  }
}

</mosaic_0001>

<llo_original>
// kernel: tpu_custom_call.1
$region0: #{tpu_custom_call.1}
  #allocation0 [shape = 'u32[]', space=smem, size = 0x4, offset = 0x4, fixed_abs, tag = 'smem constant byte address 0x4 - core index']
  #allocation1 [shape = 'u32[72,128]{1,0:T(1,128)}', space=vmem, size = 0x9000, scoped, tag = 'internal scratch']
  %s0 = inlined_call_operand.hbm [shape: f32[1,32], index: 0, kind: input, shape index: {}]
  %s1 = inlined_call_operand.hbm [shape: f32[8,32], index: 1, kind: input, shape index: {}]
  %s2 = inlined_call_operand.hbm [shape: f32[8,32], index: 2, kind: input, shape index: {}]
  %s3 = inlined_call_operand.hbm [shape: f32[8,32], index: 3, kind: output, shape index: {0}]
  %s4 = inlined_call_operand.hbm [shape: f32[8,32], index: 4, kind: output, shape index: {1}]
  %5 = xla_tuple %s3, %s4
  %s6 = sld [smem:[#allocation0]]
  $region42: #{tpu_custom_call.1} parent=0
    _
  %s8 = ssub.s32 1, %s6
  %s9 = scalar_select 0, %s8, %s6
  $region1: #{tpu_custom_call.1} parent=0
    #allocation2 [shape = 'u8[512]{0}', space=vmem, size = 0x400, scoped, tag = 'input window, operand 0, single buffered']
    #allocation3 [shape = 's32[1]{0}', space=sflag, size = 0x4, scoped, tag = 'scoped memory for tpu_custom_call.1']
    #allocation4 [shape = 's32[1]{0}', space=sflag, size = 0x4, scoped, tag = 'scoped memory for tpu_custom_call.1']
    #allocation5 [shape = 'u8[4096]{0}', space=vmem, size = 0x1000, scoped, tag = 'input window, operand 1, single buffered']
    #allocation6 [shape = 's32[1]{0}', space=sflag, size = 0x4, scoped, tag = 'scoped memory for tpu_custom_call.1']
    #allocation7 [shape = 'u8[4096]{0}', space=vmem, size = 0x1000, scoped, tag = 'input window, operand 2, single buffered']
    #allocation8 [shape = 'u8[4096]{0}', space=vmem, size = 0x1000, scoped, tag = 'output window, operand 0, single buffered']
    #allocation9 [shape = 'u8[4096]{0}', space=vmem, size = 0x1000, scoped, tag = 'output window, operand 1, single buffered']
    #allocation10 [shape = 's32[1]{0}', space=sflag, size = 0x4, scoped, tag = 'scoped memory for tpu_custom_call.1']
    %10 = vsyncpa [#allocation3], 0
    %11 = vsyncpa [#allocation6], 0
    %12 = vsyncpa [#allocation4], 0
    %13 = vsyncpa [#allocation10], 0
    // Predicated region
    $region2: #{tpu_custom_call.1} parent=1 // pred_check
      _
    $region3: #{tpu_custom_call.1} parent=1 // pred_check_branch
      %15 = sbr.rel (0) target = $region5
    $region4: #{tpu_custom_call.1} parent=1 // pred_region
      %17 = vsyncadd [#allocation3], 0
      %s19 = sshll.u32 %s0, 4
      %s20 = int_to_ptr.hbm [resolvable:$true] %s19
      %s21 = sshll.u32 [#allocation2], 4
      %s22 = int_to_ptr.vmem [resolvable:$true] %s21
      %24 = dma.hbm_to_vmem [thread:$0]  %s20, 16, %s22, [#allocation3]
    $region5: #{tpu_custom_call.1} parent=1 // pred_fallthru
      _
    // Predicated region
    $region6: #{tpu_custom_call.1} parent=1 // pred_check
      _
    $region7: #{tpu_custom_call.1} parent=1 // pred_check_branch
      %26 = sbr.rel (0) target = $region9
    $region8: #{tpu_custom_call.1} parent=1 // pred_region
      %28 = vsyncadd [#allocation6], 0
      %s30 = sshll.u32 %s1, 4
      %s31 = int_to_ptr.hbm [resolvable:$true] %s30
      %s32 = sshll.u32 [#allocation5], 4
      %s33 = int_to_ptr.vmem [resolvable:$true] %s32
      %35 = dma.hbm_to_vmem [thread:$0]  %s31, 128, %s33, [#allocation6]
    $region9: #{tpu_custom_call.1} parent=1 // pred_fallthru
      _
    // Predicated region
    $region10: #{tpu_custom_call.1} parent=1 // pred_check
      _
    $region11: #{tpu_custom_call.1} parent=1 // pred_check_branch
      %37 = sbr.rel (0) target = $region13
    $region12: #{tpu_custom_call.1} parent=1 // pred_region
      %39 = vsyncadd [#allocation6], 0
      %s41 = sshll.u32 %s2, 4
      %s42 = int_to_ptr.hbm [resolvable:$true] %s41
      %s43 = sshll.u32 [#allocation7], 4
      %s44 = int_to_ptr.vmem [resolvable:$true] %s43
      %46 = dma.hbm_to_vmem [thread:$0]  %s42, 128, %s44, [#allocation6]
    $region13: #{tpu_custom_call.1} parent=1 // pred_fallthru
      _
    // Predicated region
    $region14: #{tpu_custom_call.1} parent=1 // pred_check
      _
    $region15: #{tpu_custom_call.1} parent=1 // pred_check_branch
      %48 = sbr.rel (0) target = $region17
    $region16: #{tpu_custom_call.1} parent=1 // pred_region
      %50 = dma.done [#allocation3], 16
    $region17: #{tpu_custom_call.1} parent=1 // pred_fallthru
      _
    // Predicated region
    $region18: #{tpu_custom_call.1} parent=1 // pred_check
      _
    $region19: #{tpu_custom_call.1} parent=1 // pred_check_branch
      %52 = sbr.rel (0) target = $region21
    $region20: #{tpu_custom_call.1} parent=1 // pred_region
      %54 = dma.done [#allocation6], 128
    $region21: #{tpu_custom_call.1} parent=1 // pred_fallthru
      _
    // Predicated region
    $region22: #{tpu_custom_call.1} parent=1 // pred_check
      _
    $region23: #{tpu_custom_call.1} parent=1 // pred_check_branch
      %56 = sbr.rel (0) target = $region25
    $region24: #{tpu_custom_call.1} parent=1 // pred_region
      %58 = dma.done [#allocation6], 128
    $region25: #{tpu_custom_call.1} parent=1 // pred_fallthru
      _
    %s59 = smul.u32 0, 8
    %s60 = scvt.s32.f32 %s59
    %v61 = vld [vmem:[#allocation2] sm:$0x1]
    %v62 = vstv %s60
    %v63 = vmul.f32 %v62, %v61
    %v64 = vand.u32 2147483647, %v63
    %vm65 = vcmp.le.f32.partialorder %v64, 0.7853982
    %vm66 = vcmp.lt.s32.totalorder %v63, 0
    %v67 = vand.u32 %v63, 2139095040
    %v68 = vshrl.u32 %v67, 23
    %v69 = vsub.s32 %v68, 127
    %v70 = vand.u32 2147483647, %v63
    %v71 = vand.u32 %v70, 8388607
    %v72 = vor.u32 %v71, 8388608
    %v73 = vsub.s32 0, %v72
    %v74 = vadd.s32 %v69, 1
    %vm75 = vcmp.gt.s32.totalorder %v74, 0
    %v76 = vsel %vm75, %v74, 0
    %v77 = vshrl.u32 %v76, 5
    %v78 = vand.u32 %v76, 31
    %v79 = vsub.s32 32, %v78
    %v80 = vshrl.u32 683565275, %v79
    %v81 = vshll.u32 683565275, %v78
    %v82 = vshrl.u32 2475754826, %v79
    %v83 = vor.u32 %v81, %v82
    %v84 = vshll.u32 2475754826, %v78
    %v85 = vshrl.u32 2131351028, %v79
    %v86 = vor.u32 %v84, %v85
    %v87 = vshll.u32 2131351028, %v78
    %v88 = vshrl.u32 2102212464, %v79
    %v89 = vor.u32 %v87, %v88
    %v90 = vshll.u32 2102212464, %v78
    %v91 = vshrl.u32 920167782, %v79
    %v92 = vor.u32 %v90, %v91
    %v93 = vshll.u32 920167782, %v78
    %v94 = vshrl.u32 1326507024, %v79
    %v95 = vor.u32 %v93, %v94
    %vm96 = vcmp.lt.s32.totalorder %v77, 1
    %vm97 = vcmp.lt.s32.totalorder %v77, 2
    %vm98 = vcmp.lt.s32.totalorder %v77, 3
    %vm99 = vcmp.lt.s32.totalorder %v77, 4
    %v100 = vsel %vm96, %v80, %v83
    %v101 = vsel %vm99, %v89, 2102212464
    %v102 = vsel %vm98, %v86, %v101
    %v103 = vsel %vm97, %v100, %v102
    %v104 = vsel %vm96, %v83, %v86
    %v105 = vsel %vm99, %v92, 920167782
    %v106 = vsel %vm98, %v89, %v105
    %v107 = vsel %vm97, %v104, %v106
    %v108 = vsel %vm96, %v86, %v89
    %v109 = vsel %vm99, %v95, 1326507024
    %v110 = vsel %vm98, %v92, %v109
    %v111 = vsel %vm97, %v108, %v110
    %v112 = vshll.u32 %v72, 8
    %v113 = vand.u32 %v112, 65535
    %v114 = vshrl.u32 %v112, 16
    %v115 = vand.u32 %v111, 65535
    %v116 = vshrl.u32 %v111, 16
    %v117 = vmul.u32 %v113, %v115
    %v118 = vmul.u32 %v113, %v116
    %v119 = vmul.u32 %v114, %v115
    %v120 = vmul.u32 %v114, %v116
    %v121 = vshll.u32 %v118, 16
    %v122 = vshrl.u32 %v118, 16
    %v123 = vshll.u32 %v119, 16
    %v124 = vshrl.u32 %v119, 16
    %vm125 = vc.u32 %v117, %v121
    %v126 = vsel %vm125, 1, 0
    %v127 = vadd.s32 %v117, %v121
    %v128 = vadd.s32 %v120, %v126
    %vm129 = vc.u32 %v127, %v123
    %v130 = vsel %vm129, 1, 0
    %v131 = vadd.s32 %v127, %v123
    %v132 = vadd.s32 %v128, %v130
    %v133 = vadd.s32 %v132, %v122
    %v134 = vadd.s32 %v133, %v124
    %v135 = vand.u32 %v112, 65535
    %v136 = vshrl.u32 %v112, 16
    %v137 = vand.u32 %v107, 65535
    %v138 = vshrl.u32 %v107, 16
    %v139 = vmul.u32 %v135, %v137
    %v140 = vmul.u32 %v135, %v138
    %v141 = vmul.u32 %v136, %v137
    %v142 = vmul.u32 %v136, %v138
    %v143 = vshll.u32 %v140, 16
    %v144 = vshrl.u32 %v140, 16
    %v145 = vshll.u32 %v141, 16
    %v146 = vshrl.u32 %v141, 16
    %vm147 = vc.u32 %v139, %v143
    %v148 = vsel %vm147, 1, 0
    %v149 = vadd.s32 %v139, %v143
    %v150 = vadd.s32 %v142, %v148
    %vm151 = vc.u32 %v149, %v145
    %v152 = vsel %vm151, 1, 0
    %v153 = vadd.s32 %v149, %v145
    %v154 = vadd.s32 %v150, %v152
    %v155 = vadd.s32 %v154, %v144
    %v156 = vadd.s32 %v155, %v146
    %v157 = vmul.u32 %v112, %v103
    %v158 = vadd.s32 %v134, %v153
    %vm159 = vc.u32 %v134, %v153
    %v160 = vadd.s32 %v156, 1
    %v161 = vsel %vm159, %v160, %v156
    %v162 = vadd.s32 %v157, %v161
    %v163 = vadd.s32 %v162, 536870912
    %v164 = vshrl.u32 %v163, 30
    %v165 = vshll.u32 %v164, 30
    %v166 = vsub.s32 %v162, %v165
    %vm167 = vcmp.lt.s32.totalorder %v166, 0
    %v168 = vsub.s32 0, %v166
    %v169 = vsel %vm167, %v168, %v166
    %v170 = vclz %v169
    %v171 = vsub.s32 %v170, 2
    %vm172 = vcmp.gt.s32.totalorder 0, %v171
    %v173 = vsel %vm172, 0, %v171
    %v174 = vsub.s32 32, %v173
    %v175 = vshll.u32 %v166, %v173
    %v176 = vshrl.u32 %v158, %v174
    %v177 = vor.u32 %v175, %v176
    %v178 = vsub.s32 4294967266, %v173
    %v179 = vadd.s32 %v178, 127
    %v180 = vshll.u32 %v179, 23
    %v181 = vor.u32 4788187, %v180
    %v182 = vand.u32 2147483647, %v181
    %v184 = vcvt.s32.f32 %v177
    %v185 = vmul.f32 %v184, %v182
    %v186 = vxor.u32 %v185, 2147483648
    %v187 = vsel %vm66, %v186, %v185
    %v188 = vsub.s32 4, %v164
    %v189 = vsel %vm66, %v188, %v164
    %v190 = vsel %vm65, %v63, %v187
    %v191 = vsel %vm65, 0, %v189
    %v192 = vmul.f32 %v190, %v190
    %v193 = vmul.f32 %v192, -0.001358992
    %v194 = vadd.f32 %v193, 0.041655596
    %v195 = vmul.f32 %v192, %v194
    %v196 = vadd.f32 %v195, -0.4999988
    %v197 = vmul.f32 %v192, %v196
    %v198 = vadd.f32 1.0, %v197
    %v199 = vmul.f32 %v190, %v190
    %v200 = vmul.f32 %v199, -0.00019511016
    %v201 = vadd.f32 %v200, 0.008332121
    %v202 = vmul.f32 %v199, %v201
    %v203 = vadd.f32 %v202, -0.16666654
    %v204 = vmul.f32 %v199, %v203
    %v205 = vadd.f32 %v204, 1.0
    %v206 = vmul.f32 %v205, %v190
    %vm207 = vweird.f32 %v63
    %v208 = vand.u32 %v191, 3
    %vm209 = vcmp.lt.s32.totalorder %v208, 2
    %vm210 = vcmp.eq.s32.totalorder %v208, 0
    %v211 = vxor.u32 %v206, 2147483648
    %v212 = vsel %vm210, %v198, %v211
    %vm213 = vcmp.eq.s32.totalorder %v208, 2
    %v214 = vxor.u32 %v198, 2147483648
    %v215 = vsel %vm213, %v214, %v206
    %v216 = vsel %vm209, %v212, %v215
    %v217 = vsel %vm207, nan, %v216
    %v218 = vand.u32 2147483647, %v63
    %vm219 = vcmp.le.f32.partialorder %v218, 0.7853982
    %vm220 = vcmp.lt.s32.totalorder %v63, 0
    %v221 = vand.u32 %v63, 2139095040
    %v222 = vshrl.u32 %v221, 23
    %v223 = vsub.s32 %v222, 127
    %v224 = vand.u32 2147483647, %v63
    %v225 = vand.u32 %v224, 8388607
    %v226 = vor.u32 %v225, 8388608
    %v227 = vsub.s32 0, %v226
    %v228 = vadd.s32 %v223, 1
    %vm229 = vcmp.gt.s32.totalorder %v228, 0
    %v230 = vsel %vm229, %v228, 0
    %v231 = vshrl.u32 %v230, 5
    %v232 = vand.u32 %v230, 31
    %v233 = vsub.s32 32, %v232
    %v234 = vshrl.u32 683565275, %v233
    %v235 = vshll.u32 683565275, %v232
    %v236 = vshrl.u32 2475754826, %v233
    %v237 = vor.u32 %v235, %v236
    %v238 = vshll.u32 2475754826, %v232
    %v239 = vshrl.u32 2131351028, %v233
    %v240 = vor.u32 %v238, %v239
    %v241 = vshll.u32 2131351028, %v232
    %v242 = vshrl.u32 2102212464, %v233
    %v243 = vor.u32 %v241, %v242
    %v244 = vshll.u32 2102212464, %v232
    %v245 = vshrl.u32 920167782, %v233
    %v246 = vor.u32 %v244, %v245
    %v247 = vshll.u32 920167782, %v232
    %v248 = vshrl.u32 1326507024, %v233
    %v249 = vor.u32 %v247, %v248
    %vm250 = vcmp.lt.s32.totalorder %v231, 1
    %vm251 = vcmp.lt.s32.totalorder %v231, 2
    %vm252 = vcmp.lt.s32.totalorder %v231, 3
    %vm253 = vcmp.lt.s32.totalorder %v231, 4
    %v254 = vsel %vm250, %v234, %v237
    %v255 = vsel %vm253, %v243, 2102212464
    %v256 = vsel %vm252, %v240, %v255
    %v257 = vsel %vm251, %v254, %v256
    %v258 = vsel %vm250, %v237, %v240
    %v259 = vsel %vm253, %v246, 920167782
    %v260 = vsel %vm252, %v243, %v259
    %v261 = vsel %vm251, %v258, %v260
    %v262 = vsel %vm250, %v240, %v243
    %v263 = vsel %vm253, %v249, 1326507024
    %v264 = vsel %vm252, %v246, %v263
    %v265 = vsel %vm251, %v262, %v264
    %v266 = vshll.u32 %v226, 8
    %v267 = vand.u32 %v266, 65535
    %v268 = vshrl.u32 %v266, 16
    %v269 = vand.u32 %v265, 65535
    %v270 = vshrl.u32 %v265, 16
    %v271 = vmul.u32 %v267, %v269
    %v272 = vmul.u32 %v267, %v270
    %v273 = vmul.u32 %v268, %v269
    %v274 = vmul.u32 %v268, %v270
    %v275 = vshll.u32 %v272, 16
    %v276 = vshrl.u32 %v272, 16
    %v277 = vshll.u32 %v273, 16
    %v278 = vshrl.u32 %v273, 16
    %vm279 = vc.u32 %v271, %v275
    %v280 = vsel %vm279, 1, 0
    %v281 = vadd.s32 %v271, %v275
    %v282 = vadd.s32 %v274, %v280
    %vm283 = vc.u32 %v281, %v277
    %v284 = vsel %vm283, 1, 0
    %v285 = vadd.s32 %v281, %v277
    %v286 = vadd.s32 %v282, %v284
    %v287 = vadd.s32 %v286, %v276
    %v288 = vadd.s32 %v287, %v278
    %v289 = vand.u32 %v266, 65535
    %v290 = vshrl.u32 %v266, 16
    %v291 = vand.u32 %v261, 65535
    %v292 = vshrl.u32 %v261, 16
    %v293 = vmul.u32 %v289, %v291
    %v294 = vmul.u32 %v289, %v292
    %v295 = vmul.u32 %v290, %v291
    %v296 = vmul.u32 %v290, %v292
    %v297 = vshll.u32 %v294, 16
    %v298 = vshrl.u32 %v294, 16
    %v299 = vshll.u32 %v295, 16
    %v300 = vshrl.u32 %v295, 16
    %vm301 = vc.u32 %v293, %v297
    %v302 = vsel %vm301, 1, 0
    %v303 = vadd.s32 %v293, %v297
    %v304 = vadd.s32 %v296, %v302
    %vm305 = vc.u32 %v303, %v299
    %v306 = vsel %vm305, 1, 0
    %v307 = vadd.s32 %v303, %v299
    %v308 = vadd.s32 %v304, %v306
    %v309 = vadd.s32 %v308, %v298
    %v310 = vadd.s32 %v309, %v300
    %v311 = vmul.u32 %v266, %v257
    %v312 = vadd.s32 %v288, %v307
    %vm313 = vc.u32 %v288, %v307
    %v314 = vadd.s32 %v310, 1
    %v315 = vsel %vm313, %v314, %v310
    %v316 = vadd.s32 %v311, %v315
    %v317 = vadd.s32 %v316, 536870912
    %v318 = vshrl.u32 %v317, 30
    %v319 = vshll.u32 %v318, 30
    %v320 = vsub.s32 %v316, %v319
    %vm321 = vcmp.lt.s32.totalorder %v320, 0
    %v322 = vsub.s32 0, %v320
    %v323 = vsel %vm321, %v322, %v320
    %v324 = vclz %v323
    %v325 = vsub.s32 %v324, 2
    %vm326 = vcmp.gt.s32.totalorder 0, %v325
    %v327 = vsel %vm326, 0, %v325
    %v328 = vsub.s32 32, %v327
    %v329 = vshll.u32 %v320, %v327
    %v330 = vshrl.u32 %v312, %v328
    %v331 = vor.u32 %v329, %v330
    %v332 = vsub.s32 4294967266, %v327
    %v333 = vadd.s32 %v332, 127
    %v334 = vshll.u32 %v333, 23
    %v335 = vor.u32 4788187, %v334
    %v336 = vand.u32 2147483647, %v335
    %v338 = vcvt.s32.f32 %v331
    %v339 = vmul.f32 %v338, %v336
    %v340 = vxor.u32 %v339, 2147483648
    %v341 = vsel %vm220, %v340, %v339
    %v342 = vsub.s32 4, %v318
    %v343 = vsel %vm220, %v342, %v318
    %v344 = vsel %vm219, %v63, %v341
    %v345 = vsel %vm219, 0, %v343
    %v346 = vmul.f32 %v344, %v344
    %v347 = vmul.f32 %v346, -0.001358992
    %v348 = vadd.f32 %v347, 0.041655596
    %v349 = vmul.f32 %v346, %v348
    %v350 = vadd.f32 %v349, -0.4999988
    %v351 = vmul.f32 %v346, %v350
    %v352 = vadd.f32 1.0, %v351
    %v353 = vmul.f32 %v344, %v344
    %v354 = vmul.f32 %v353, -0.00019511016
    %v355 = vadd.f32 %v354, 0.008332121
    %v356 = vmul.f32 %v353, %v355
    %v357 = vadd.f32 %v356, -0.16666654
    %v358 = vmul.f32 %v353, %v357
    %v359 = vadd.f32 %v358, 1.0
    %v360 = vmul.f32 %v359, %v344
    %vm361 = vweird.f32 %v63
    %v362 = vadd.s32 %v345, 3
    %v363 = vand.u32 %v362, 3
    %vm364 = vcmp.lt.s32.totalorder %v363, 2
    %vm365 = vcmp.eq.s32.totalorder %v363, 0
    %v366 = vxor.u32 %v360, 2147483648
    %v367 = vsel %vm365, %v352, %v366
    %vm368 = vcmp.eq.s32.totalorder %v363, 2
    %v369 = vxor.u32 %v352, 2147483648
    %v370 = vsel %vm368, %v369, %v360
    %v371 = vsel %vm364, %v367, %v370
    %v372 = vsel %vm361, nan, %v371
    %v373 = vld [vmem:[#allocation5] sm:$0xff]
    %v374 = vld [vmem:[#allocation7] sm:$0xff]
    %v376 = vperm.slane %v217, 0
    %v378 = vmul.f32 %v376, %v373
    %v380 = vperm.slane %v372, 0
    %v382 = vmul.f32 %v380, %v374
    %v383 = vsub.f32 %v378, %v382
    %vm384 = vcmask 261120
    %385 = vst.msk [vmem:[#allocation8] sm:$0xff] %vm384, %v383
    %v386 = vmul.f32 %v380, %v373
    %v387 = vmul.f32 %v376, %v374
    %v388 = vadd.f32 %v386, %v387
    %389 = vst.msk [vmem:[#allocation9] sm:$0xff] %vm384, %v388
    // Predicated region
    $region26: #{tpu_custom_call.1} parent=1 // pred_check
      _
    $region27: #{tpu_custom_call.1} parent=1 // pred_check_branch
      %391 = sbr.rel (0) target = $region29
    $region28: #{tpu_custom_call.1} parent=1 // pred_region
      %393 = vsyncadd [#allocation4], 0
      %s395 = sshll.u32 [#allocation8], 4
      %s396 = int_to_ptr.vmem [resolvable:$true] %s395
      %s397 = sshll.u32 %s3, 4
      %s398 = int_to_ptr.hbm [resolvable:$true] %s397
      %400 = dma.vmem_to_hbm [thread:$0]  %s396, 128, %s398, [#allocation4]
    $region29: #{tpu_custom_call.1} parent=1 // pred_fallthru
      _
    // Predicated region
    $region30: #{tpu_custom_call.1} parent=1 // pred_check
      _
    $region31: #{tpu_custom_call.1} parent=1 // pred_check_branch
      %402 = sbr.rel (0) target = $region33
    $region32: #{tpu_custom_call.1} parent=1 // pred_region
      %404 = vsyncadd [#allocation10], 0
      %s406 = sshll.u32 [#allocation9], 4
      %s407 = int_to_ptr.vmem [resolvable:$true] %s406
      %s408 = sshll.u32 %s4, 4
      %s409 = int_to_ptr.hbm [resolvable:$true] %s408
      %411 = dma.vmem_to_hbm [thread:$0]  %s407, 128, %s409, [#allocation10]
    $region33: #{tpu_custom_call.1} parent=1 // pred_fallthru
      _
    // Predicated region
    $region34: #{tpu_custom_call.1} parent=1 // pred_check
      _
    $region35: #{tpu_custom_call.1} parent=1 // pred_check_branch
      %413 = sbr.rel (0) target = $region37
    $region36: #{tpu_custom_call.1} parent=1 // pred_region
      %415 = dma.done [#allocation4], 128
    $region37: #{tpu_custom_call.1} parent=1 // pred_fallthru
      _
    // Predicated region
    $region38: #{tpu_custom_call.1} parent=1 // pred_check
      _
    $region39: #{tpu_custom_call.1} parent=1 // pred_check_branch
      %417 = sbr.rel (0) target = $region41
    $region40: #{tpu_custom_call.1} parent=1 // pred_region
      %419 = dma.done [#allocation10], 128
    $region41: #{tpu_custom_call.1} parent=1 // pred_fallthru
      _
    %420 = vsyncpa [#allocation3], 1
    %421 = vsyncpa [#allocation6], 1
    %422 = vsyncpa [#allocation4], 1
    %423 = vsyncpa [#allocation10], 1

</llo_original>
